<compile_context>
chip_gen: v5e
topology: v5e:2x2
jax: 0.10.0
libtpu: 0.0.40
codegen_flags: <defaults>
</compile_context>

<pallas_src>
import functools

import jax
import jax.numpy as jnp
from jax.experimental import pallas as pl
from jax.experimental.pallas import tpu as pltpu


def classifier_kernel(x_ref, w_ref, b_ref, o_ref):
    # Classifier.forward:
    #   output = dropout(x)         # dropout_rate = 0.0 -> identity
    #   output = linear(output)     # x @ W.T + b  (W pre-transposed + padded)
    #   if activation is not None:  # activation = None in this config
    #       output = activation(output)
    acc = jnp.dot(x_ref[...], w_ref[...], preferred_element_type=jnp.float32)
    o_ref[...] = (acc + b_ref[...]).astype(o_ref.dtype)


def _round_up(x, m):
    return ((x + m - 1) // m) * m


@functools.partial(jax.jit, static_argnames=("tile_b",))
def classifier_forward(x, w, b, *, tile_b=256):
    """Classifier head: x @ W.T + b.

    x: [B, H] float32
    w: [O, H] float32 (PyTorch nn.Linear layout)
    b: [O]    float32
    returns [B, O] float32
    """
    B, H = x.shape
    O = w.shape[0]

    # Lane-dense output: pad O up to a multiple of 128 (zero columns).
    O_pad = _round_up(max(O, 128), 128)
    w_t = jnp.zeros((H, O_pad), x.dtype).at[:, :O].set(w.T)
    b_p = jnp.zeros((1, O_pad), x.dtype).at[:, :O].set(b.reshape(1, O))

    # Sublane-aligned batch tile; zero-pad batch so the grid divides evenly.
    B_pad = _round_up(max(B, 8), 8)
    tile = min(tile_b, B_pad)           # tile is a multiple of 8
    B_pad = _round_up(B_pad, tile)
    x_p = x if B_pad == B else jnp.zeros((B_pad, H), x.dtype).at[:B, :].set(x)

    grid = (B_pad // tile,)

    cost = pl.CostEstimate(
        flops=2 * B_pad * H * O_pad,
        transcendentals=0,
        bytes_accessed=4 * (B_pad * H + H * O_pad + B_pad * O_pad),
    )

    out_pad = pl.pallas_call(
        classifier_kernel,
        out_shape=jax.ShapeDtypeStruct((B_pad, O_pad), x.dtype),
        grid_spec=pltpu.PrefetchScalarGridSpec(
            num_scalar_prefetch=0,
            grid=grid,
            in_specs=[
                pl.BlockSpec((tile, H), lambda i: (i, 0)),      # x tile
                pl.BlockSpec((H, O_pad), lambda i: (0, 0)),     # full weight
                pl.BlockSpec((1, O_pad), lambda i: (0, 0)),     # bias row
            ],
            out_specs=pl.BlockSpec((tile, O_pad), lambda i: (i, 0)),
        ),
        compiler_params=pltpu.CompilerParams(
            dimension_semantics=("parallel",)),
        cost_estimate=cost,
    )(x_p, w_t, b_p)

    # Strip the batch / lane padding.
    return out_pad[:B, :O]


if __name__ == "__main__":
    # Small shapes consistent with the module:
    #   hidden_size = 32 (Classifier input_size), output_size = 16,
    #   batch = 8 patients (one attention-pooled hidden vector each).
    B, H, O = 8, 32, 16
    key = jax.random.PRNGKey(0)
    kx, kw, kb = jax.random.split(key, 3)

    # `x` stands in for torch.vstack(output) — the per-patient attention
    # outputs fed to the Classifier.
    x = jax.random.normal(kx, (B, H), dtype=jnp.float32)

    # Deterministic nn.Linear(H, O) parameters, Kaiming-uniform-like scale.
    bound = 1.0 / jnp.sqrt(H)
    w = jax.random.uniform(kw, (O, H), minval=-bound, maxval=bound,
                           dtype=jnp.float32)      # PyTorch layout [out, in]
    b = jax.random.uniform(kb, (O,), minval=-bound, maxval=bound,
                           dtype=jnp.float32)

    out = classifier_forward(x, w, b)
    out = jax.block_until_ready(out)

    # Reference check against plain JAX (x @ W.T + b).
    ref = x @ w.T + b[None, :]
    assert out.shape == (B, O)
    assert jnp.allclose(out, ref, atol=1e-5, rtol=1e-5)

    print("KERNEL_OK")
</pallas_src>

<mosaic_0001>
module attributes {stable_mosaic.version = 11 : i64} {
  func.func @classifier_kernel(%arg0: i32, %arg1: memref<8x32xf32, #tpu.memory_space<vmem>>, %arg2: memref<32x128xf32, #tpu.memory_space<vmem>>, %arg3: memref<1x128xf32, #tpu.memory_space<vmem>>, %arg4: memref<8x128xf32, #tpu.memory_space<vmem>>) attributes {dimension_semantics = [#tpu.dimension_semantics<parallel>], iteration_bounds = array<i64: 1>, scalar_prefetch = 0 : i64, scratch_operands = 0 : i64, tpu.core_type = #tpu.core_type<tc>, window_params = [{transform_indices = @transform_0, window_bounds = array<i64: 8, 32>}, {pipeline_mode = #tpu.pipeline_mode<synchronous>, transform_indices = @transform_1, window_bounds = array<i64: 32, 128>}, {pipeline_mode = #tpu.pipeline_mode<synchronous>, transform_indices = @transform_2, window_bounds = array<i64: 1, 128>}, {transform_indices = @transform_3, window_bounds = array<i64: 8, 128>}]} {
    %c0 = arith.constant 0 : index
    %c0_0 = arith.constant 0 : index
    %0 = vector.load %arg1[%c0, %c0_0] : memref<8x32xf32, #tpu.memory_space<vmem>>, vector<8x32xf32>
    %c0_1 = arith.constant 0 : index
    %c0_2 = arith.constant 0 : index
    %1 = vector.load %arg2[%c0_1, %c0_2] : memref<32x128xf32, #tpu.memory_space<vmem>>, vector<32x128xf32>
    %cst = arith.constant dense<0.000000e+00> : vector<8x128xf32>
    %2 = tpu.matmul %0, %1, %cst {dimension_numbers = #tpu.dot_dimension_numbers<[1], [0], [0], [1], [0, 0, 1, 1], [], []>} : vector<8x32xf32>, vector<32x128xf32>, vector<8x128xf32> -> vector<8x128xf32>
    %c0_3 = arith.constant 0 : index
    %c0_4 = arith.constant 0 : index
    %3 = vector.load %arg3[%c0_3, %c0_4] : memref<1x128xf32, #tpu.memory_space<vmem>>, vector<1x128xf32>
    %4 = vector.broadcast %3 : vector<1x128xf32> to vector<8x128xf32>
    %5 = arith.addf %2, %4 : vector<8x128xf32>
    %c0_5 = arith.constant 0 : index
    %c0_6 = arith.constant 0 : index
    %6 = vector.load %arg4[%c0_5, %c0_6] : memref<8x128xf32, #tpu.memory_space<vmem>>, vector<8x128xf32>
    tpu.vector_store %arg4[%c0_5, %c0_6], %5 {strides = array<i32>} : memref<8x128xf32, #tpu.memory_space<vmem>>, vector<8x128xf32>,
    return
  }
  func.func @transform_0(%arg0: i32) -> (i32, i32) {
    %c0_i32 = arith.constant 0 : i32
    %c0_i32_0 = arith.constant 0 : i32
    return %arg0, %c0_i32 : i32, i32
  }
  func.func @transform_1(%arg0: i32) -> (i32, i32) {
    %c0_i32 = arith.constant 0 : i32
    %c0_i32_0 = arith.constant 0 : i32
    %c0_i32_1 = arith.constant 0 : i32
    return %c0_i32, %c0_i32_0 : i32, i32
  }
  func.func @transform_2(%arg0: i32) -> (i32, i32) {
    %c0_i32 = arith.constant 0 : i32
    %c0_i32_0 = arith.constant 0 : i32
    %c0_i32_1 = arith.constant 0 : i32
    return %c0_i32, %c0_i32_0 : i32, i32
  }
  func.func @transform_3(%arg0: i32) -> (i32, i32) {
    %c0_i32 = arith.constant 0 : i32
    %c0_i32_0 = arith.constant 0 : i32
    return %arg0, %c0_i32 : i32, i32
  }
}

</mosaic_0001>

<llo_original>
// kernel: classifier_forward.1
$region0: #{classifier_forward.1}
  #allocation0 [shape = 'u32[]', space=smem, size = 0x4, offset = 0x4, fixed_abs, tag = 'smem constant byte address 0x4 - core index']
  #allocation1 [shape = 'u32[72,128]{1,0:T(1,128)}', space=vmem, size = 0x9000, scoped, tag = 'internal scratch']
  %s0 = inlined_call_operand.vmem [shape: f32[8,32], index: 0, kind: input, shape index: {}]
  %s1 = inlined_call_operand.vmem [shape: f32[32,128], index: 1, kind: input, shape index: {}]
  %s2 = inlined_call_operand.vmem [shape: f32[1,128], index: 2, kind: input, shape index: {}]
  %s3 = inlined_call_operand.hbm [shape: f32[8,128], index: 3, kind: output, shape index: {}]
  %s4 = sld [smem:[#allocation0]]
  $region22: #{classifier_forward.1} parent=0
    _
  %s6 = ssub.s32 1, %s4
  %s7 = scalar_select 0, %s6, %s4
  $region1: #{classifier_forward.1} parent=0
    #allocation2 [shape = 'u8[4096]{0}', space=vmem, size = 0x1000, scoped, tag = 'output window, operand 0, single buffered']
    #allocation3 [shape = 's32[1]{0}', space=sflag, size = 0x4, scoped, tag = 'scoped memory for classifier_forward.1']
    %8 = vsyncpa [#allocation3], 0
    // Predicated region
    $region2: #{classifier_forward.1} parent=1 // pred_check
      _
    $region3: #{classifier_forward.1} parent=1 // pred_check_branch
      %10 = sbr.rel (0) target = $region5
    $region4: #{classifier_forward.1} parent=1 // pred_region
      _
    $region5: #{classifier_forward.1} parent=1 // pred_fallthru
      _
    // Predicated region
    $region6: #{classifier_forward.1} parent=1 // pred_check
      _
    $region7: #{classifier_forward.1} parent=1 // pred_check_branch
      %12 = sbr.rel (0) target = $region9
    $region8: #{classifier_forward.1} parent=1 // pred_region
      _
    $region9: #{classifier_forward.1} parent=1 // pred_fallthru
      _
    // Predicated region
    $region10: #{classifier_forward.1} parent=1 // pred_check
      _
    $region11: #{classifier_forward.1} parent=1 // pred_check_branch
      %14 = sbr.rel (0) target = $region13
    $region12: #{classifier_forward.1} parent=1 // pred_region
      _
    $region13: #{classifier_forward.1} parent=1 // pred_fallthru
      _
    %v15 = vld [vmem:[%s0] sm:$0xff]
    %v16 = vld [vmem:[%s1] sm:$0xff]
    %v17 = vld [vmem:[%s1 + $0x8] sm:$0xff]
    %v18 = vld [vmem:[%s1 + $0x10] sm:$0xff]
    %v19 = vld [vmem:[%s1 + $0x18] sm:$0xff]
    %v20 = vld [vmem:[%s2] sm:$0x1]
    %v22 = vperm.slane %v20, 0
    %vm24 = vcmask 261120
    %v26 = vsel %vm24, %v15, 0
    %28 = vmatpush.msra.mxu0 0.0
    %29 = vmatpush.msra.mxu0 0.0
    %30 = vmatpush.msra.mxu0 0.0
    %31 = vmatpush.msra.mxu0 0.0
    %32 = vmatpush.msra.mxu0 0.0
    %33 = vmatpush.msra.mxu0 0.0
    %34 = vmatpush.msra.mxu0 0.0
    %35 = vmatpush.msra.mxu0 0.0
    %36 = vmatpush.msra.mxu0 0.0
    %37 = vmatpush.msra.mxu0 0.0
    %38 = vmatpush.msra.mxu0 0.0
    %39 = vmatpush.msra.mxu0 0.0
    %40 = vmatpush.msra.mxu0 %v19
    %41 = vmatpush.msra.mxu0 %v18
    %42 = vmatpush.msra.mxu0 %v17
    %43 = vmatpush.msra.mxu0 %v16
    %44 = vmatmul.f32.gmra.mxu0 %v26
    %v45 = vpop.f32.mrf.mxu0
    %v46 = vadd.f32 %v22, %v45
    %47 = vdwg.mxu0
    %48 = vst [vmem:[#allocation2] sm:$0xff] %v46
    // Predicated region
    $region14: #{classifier_forward.1} parent=1 // pred_check
      _
    $region15: #{classifier_forward.1} parent=1 // pred_check_branch
      %50 = sbr.rel (0) target = $region17
    $region16: #{classifier_forward.1} parent=1 // pred_region
      %52 = vsyncadd [#allocation3], 0
      %s54 = sshll.u32 [#allocation2], 4
      %s55 = int_to_ptr.vmem [resolvable:$true] %s54
      %s56 = sshll.u32 %s3, 4
      %s57 = int_to_ptr.hbm [resolvable:$true] %s56
      %59 = dma.vmem_to_hbm [thread:$0]  %s55, 128, %s57, [#allocation3]
    $region17: #{classifier_forward.1} parent=1 // pred_fallthru
      _
    // Predicated region
    $region18: #{classifier_forward.1} parent=1 // pred_check
      _
    $region19: #{classifier_forward.1} parent=1 // pred_check_branch
      %61 = sbr.rel (0) target = $region21
    $region20: #{classifier_forward.1} parent=1 // pred_region
      %63 = dma.done [#allocation3], 128
    $region21: #{classifier_forward.1} parent=1 // pred_fallthru
      _
    %64 = vsyncpa [#allocation3], 1

</llo_original>
